<compile_context>
chip_gen: v7x
topology: tpu7x:2x2x1
jax: 0.10.0
libtpu: 0.0.40
codegen_flags: <defaults>
</compile_context>

<pallas_src>
import jax
import jax.numpy as jnp
from jax import lax
from jax.experimental import pallas as pl
from jax.experimental.pallas import tpu as pltpu


def _round_up(x, m):
    return ((x + m - 1) // m) * m


# ---------------------------------------------------------------------------
# Kernels
# ---------------------------------------------------------------------------

def _pair_kernel_batch_major(post_ref, acc_ref, w1p_ref, w1a_ref, b1_ref,
                             w2_ref, b2_ref, o_ref):
    """Module-faithful [B, D] layout.

    post_ref: [TB, Dp], acc_ref: [TB, Dr]   (streamed, double-buffered)
    w1p_ref:  [Dp, H],  w1a_ref: [Dr, H]    (VMEM resident)
    b1_ref:   [1, H] f32, w2_ref: [1, H] f32 (VMEM resident)
    b2_ref:   [1] f32 in SMEM
    o_ref:    [1, 1, TB] f32 lane-dense logits row for this batch tile
    """
    # Layer 1 with torch.cat fused away: h = relu(post @ W1_post + acc @ W1_acc + b1).
    h = jnp.dot(post_ref[...], w1p_ref[...], preferred_element_type=jnp.float32)
    h = h + jnp.dot(acc_ref[...], w1a_ref[...], preferred_element_type=jnp.float32)
    h = jnp.maximum(h + b1_ref[...], 0.0)
    # Dropout: eval mode => identity.
    # TODO(synk): training-mode dropout would use pltpu.prng_seed / pltpu.prng_random_bits.

    # Layer 2: (1, H) x (TB, H) contracting H with H -- same NT pattern as flash-attention's
    # q.k^T, so h is never materialized transposed and the result is already a lane-dense
    # (1, TB) row (no masked lane-sparse stores).
    row = lax.dot_general(w2_ref[...], h, (((1,), (1,)), ((), ())),
                          preferred_element_type=jnp.float32)
    o_ref[0] = row + b2_ref[0]


def _pair_kernel_feature_major(post_ref, acc_ref, w1p_ref, w1a_ref, b1_ref,
                               w2_ref, b2_ref, o_ref):
    """Lane-dense layout: batch on the 128-lane axis (producer emits [D, B]).

    post_ref: [Dp, TB], acc_ref: [Dr, TB]   (streamed, no 128-lane padding)
    w1p_ref:  [H, Dp],  w1a_ref: [H, Dr]    (VMEM resident)
    b1_ref:   [H, 1] f32, w2_ref: [1, H] f32
    b2_ref:   [1] f32 in SMEM
    o_ref:    [1, 1, TB] f32
    """
    h = jnp.dot(w1p_ref[...], post_ref[...], preferred_element_type=jnp.float32)
    h = h + jnp.dot(w1a_ref[...], acc_ref[...], preferred_element_type=jnp.float32)
    h = jnp.maximum(h + b1_ref[...], 0.0)          # [H, TB]; batch stays on lanes
    # Dropout: eval mode => identity.
    row = jnp.dot(w2_ref[...], h, preferred_element_type=jnp.float32)   # [1, TB]
    o_ref[0] = row + b2_ref[0]


# ---------------------------------------------------------------------------
# Tile sizing
# ---------------------------------------------------------------------------

def _choose_batch_tile(batch, bytes_per_row, requested, vmem_budget_bytes, tile_cap):
    """Pick the per-step batch tile (multiple of 128) from a VMEM budget."""
    if requested is not None:
        tb = max(128, _round_up(int(requested), 128))
    else:
        fit = int(vmem_budget_bytes) // max(1, int(bytes_per_row))
        tb = min((fit // 128) * 128, tile_cap)
        tb = max(tb, 128)
    b_r = _round_up(batch, 128)
    tb = min(tb, b_r)
    # Keep >= 2 grid steps when the batch allows it: the 1-D "parallel" grid is sharded
    # across v7x's two TensorCores, and a single tile would idle a whole core.
    if b_r >= 256 and pl.cdiv(batch, tb) < 2:
        tb = max(128, _round_up(pl.cdiv(batch, 2), 128))
    return tb


# ---------------------------------------------------------------------------
# Factory: hoists all weight preprocessing out of the per-call path
# ---------------------------------------------------------------------------

def make_pair_classifier(w1, b1, w2, b2, post_dim, *, compute_dtype=jnp.float32,
                         transposed_inputs=False, block_rows=None,
                         vmem_budget_bytes=20 << 20, max_block_rows=16384):
    """Returns a jitted eval-mode forward for PairClassifier.

    w1: [Dp + Dr, H], b1: [H], w2: [H] (or [H, 1]), b2: scalar.

    compute_dtype: dtype of the activation streams / W1 fed to the MXU.  Pass
      jnp.bfloat16 on v6e/v7x only when the producer already emits bf16 activations;
      casting inside the wrapper would add an extra HBM pass.  Bias add / ReLU /
      accumulation stay f32 either way.
    transposed_inputs: if True, forward takes producer-emitted [Dp, B] / [Dr, B]
      activations (batch on the lane axis) -> lane-dense streamed blocks and a
      transpose-free layer 2.  If False, forward matches the PyTorch module's
      [B, Dp] / [B, Dr] interface with no wrapper-side layout pass.
    """
    w1 = jnp.asarray(w1, jnp.float32)
    d_in, hidden = w1.shape
    post_dim = int(post_dim)
    rw_dim = d_in - post_dim
    assert 0 < post_dim < d_in

    # One-time weight preprocessing (split the concat, orient for the chosen layout, cast).
    w1_post = w1[:post_dim]
    w1_acc = w1[post_dim:]
    if transposed_inputs:
        w1_post = w1_post.T                                   # [H, Dp]
        w1_acc = w1_acc.T                                     # [H, Dr]
        b1_r = jnp.asarray(b1, jnp.float32).reshape(hidden, 1)
    else:
        b1_r = jnp.asarray(b1, jnp.float32).reshape(1, hidden)
    w1_post = w1_post.astype(compute_dtype)
    w1_acc = w1_acc.astype(compute_dtype)
    w2_r = jnp.asarray(w2, jnp.float32).reshape(1, hidden)
    b2_r = jnp.asarray(b2, jnp.float32).reshape(1)

    act_itemsize = jnp.dtype(compute_dtype).itemsize
    weight_bytes = (w1_post.size + w1_acc.size) * act_itemsize + (2 * hidden + 1) * 4
    kernel = (_pair_kernel_feature_major if transposed_inputs
              else _pair_kernel_batch_major)

    def forward(post_vec, acc_vec):
        if transposed_inputs:
            dp, batch = post_vec.shape
            dr, batch2 = acc_vec.shape
        else:
            batch, dp = post_vec.shape
            batch2, dr = acc_vec.shape
        assert batch == batch2 and dp == post_dim and dr == rw_dim

        # Only cast when the producer handed us a different dtype (that cast is an extra
        # HBM pass -- prefer fusing it into the upstream producer).
        if post_vec.dtype != compute_dtype:
            post_vec = post_vec.astype(compute_dtype)
        if acc_vec.dtype != compute_dtype:
            acc_vec = acc_vec.astype(compute_dtype)

        # Per-batch-row VMEM cost of one grid step: double-buffered activation streams plus
        # the f32 hidden intermediate.  Batch-major blocks are lane-padded to 128 (16-wide
        # features cost 8x); feature-major blocks are dense (sublane padding to 8 only).
        if transposed_inputs:
            per_row = 2 * (_round_up(dp, 8) + _round_up(dr, 8)) * act_itemsize
            per_row += _round_up(hidden, 8) * 4
        else:
            per_row = 2 * (_round_up(dp, 128) + _round_up(dr, 128)) * act_itemsize
            per_row += _round_up(hidden, 128) * 4
        per_row += 8                                  # double-buffered f32 logits row

        tb = _choose_batch_tile(batch, per_row, block_rows, vmem_budget_bytes,
                                max_block_rows)
        # No jnp.pad of the batch: the partial last block reads OOB garbage and its logits
        # are sliced off below with [:batch].
        num_tiles = pl.cdiv(batch, tb)

        est_bytes = per_row * tb + 2 * weight_bytes + (4 << 20)
        vmem_limit = int(min(64 << 20, max(32 << 20, est_bytes)))

        if transposed_inputs:
            post_spec = pl.BlockSpec((dp, tb), lambda i: (0, i))
            acc_spec = pl.BlockSpec((dr, tb), lambda i: (0, i))
            w1p_spec = pl.BlockSpec((hidden, dp), lambda i: (0, 0))
            w1a_spec = pl.BlockSpec((hidden, dr), lambda i: (0, 0))
            b1_spec = pl.BlockSpec((hidden, 1), lambda i: (0, 0))
        else:
            post_spec = pl.BlockSpec((tb, dp), lambda i: (i, 0))
            acc_spec = pl.BlockSpec((tb, dr), lambda i: (i, 0))
            w1p_spec = pl.BlockSpec((dp, hidden), lambda i: (0, 0))
            w1a_spec = pl.BlockSpec((dr, hidden), lambda i: (0, 0))
            b1_spec = pl.BlockSpec((1, hidden), lambda i: (0, 0))

        out = pl.pallas_call(
            kernel,
            out_shape=jax.ShapeDtypeStruct((num_tiles, 1, tb), jnp.float32),
            grid=(num_tiles,),
            in_specs=[
                post_spec,                                    # streamed activations
                acc_spec,                                     # streamed activations
                w1p_spec,                                     # resident weights
                w1a_spec,
                b1_spec,
                pl.BlockSpec((1, hidden), lambda i: (0, 0)),  # resident w2 row (f32)
                pl.BlockSpec(memory_space=pltpu.MemorySpace.SMEM),  # b2 scalar
            ],
            out_specs=pl.BlockSpec((1, 1, tb), lambda i: (i, 0, 0)),
            compiler_params=pltpu.CompilerParams(
                dimension_semantics=("parallel",),
                vmem_limit_bytes=vmem_limit),
        )(post_vec, acc_vec, w1_post, w1_acc, b1_r, w2_r, b2_r)

        # squeeze(1) + drop the garbage tail of the partial last block.
        return out.reshape(num_tiles * tb)[:batch]

    return jax.jit(forward)


def init_params(key, post_dim, rw_dim, hidden_dim):
    """Deterministic init mimicking PyTorch nn.Linear default (uniform +/- 1/sqrt(fan_in))."""
    d_in = post_dim + rw_dim
    k1, k2, k3, k4 = jax.random.split(key, 4)
    lim1 = 1.0 / jnp.sqrt(d_in)
    lim2 = 1.0 / jnp.sqrt(hidden_dim)
    w1 = jax.random.uniform(k1, (d_in, hidden_dim), jnp.float32, -lim1, lim1)
    b1 = jax.random.uniform(k2, (hidden_dim,), jnp.float32, -lim1, lim1)
    w2 = jax.random.uniform(k3, (hidden_dim,), jnp.float32, -lim2, lim2)
    b2 = jax.random.uniform(k4, (), jnp.float32, -lim2, lim2)
    return w1, b1, w2, b2


if __name__ == "__main__":
    # Small shapes consistent with the module's forward.
    B, POST_DIM, RW_DIM, HIDDEN = 8, 16, 16, 64

    key = jax.random.PRNGKey(0)
    k_post, k_acc, k_params = jax.random.split(key, 3)
    post_vec = jax.random.normal(k_post, (B, POST_DIM), jnp.float32)
    acc_vec = jax.random.normal(k_acc, (B, RW_DIM), jnp.float32)
    w1, b1, w2, b2 = init_params(k_params, POST_DIM, RW_DIM, HIDDEN)

    # Pure-JAX reference (eval-mode dropout == identity).
    x = jnp.concatenate([post_vec, acc_vec], axis=1)
    ref = jnp.maximum(x @ w1 + b1, 0.0) @ w2 + b2

    # 1) Module-faithful batch-major path ([B, D] inputs, f32, no wrapper HBM passes).
    fwd = make_pair_classifier(w1, b1, w2, b2, POST_DIM)
    logits = jax.block_until_ready(fwd(post_vec, acc_vec))
    assert logits.shape == (B,)
    assert jnp.allclose(logits, ref, atol=1e-4, rtol=1e-4), \
        float(jnp.max(jnp.abs(logits - ref)))

    # 2) Lane-dense feature-major path: the producer emits [D, B] activations.
    #    (Demo only: here we build the transposed views explicitly.)
    fwd_t = make_pair_classifier(w1, b1, w2, b2, POST_DIM, transposed_inputs=True)
    logits_t = jax.block_until_ready(fwd_t(post_vec.T, acc_vec.T))
    assert logits_t.shape == (B,)
    assert jnp.allclose(logits_t, ref, atol=1e-4, rtol=1e-4), \
        float(jnp.max(jnp.abs(logits_t - ref)))

    # 3) bf16 streaming (v6e/v7x fast path) with producer-supplied bf16 activations.
    fwd_bf16 = make_pair_classifier(w1, b1, w2, b2, POST_DIM,
                                    compute_dtype=jnp.bfloat16,
                                    transposed_inputs=True)
    logits_bf16 = jax.block_until_ready(
        fwd_bf16(post_vec.T.astype(jnp.bfloat16), acc_vec.T.astype(jnp.bfloat16)))
    assert logits_bf16.shape == (B,)
    assert jnp.allclose(logits_bf16, ref, atol=2.5e-1), \
        float(jnp.max(jnp.abs(logits_bf16 - ref)))

    # 4) Multi-tile coverage: B not a multiple of the tile (partial last block, garbage
    #    tail sliced) and >= 2 grid steps for the v7x megacore split.
    B2 = 300
    k_p2, k_a2 = jax.random.split(jax.random.PRNGKey(1))
    post2 = jax.random.normal(k_p2, (B2, POST_DIM), jnp.float32)
    acc2 = jax.random.normal(k_a2, (B2, RW_DIM), jnp.float32)
    ref2 = jnp.maximum(jnp.concatenate([post2, acc2], axis=1) @ w1 + b1, 0.0) @ w2 + b2
    logits2 = jax.block_until_ready(fwd(post2, acc2))
    assert logits2.shape == (B2,)
    assert jnp.allclose(logits2, ref2, atol=1e-4, rtol=1e-4), \
        float(jnp.max(jnp.abs(logits2 - ref2)))

    print("KERNEL_OK")
</pallas_src>

<mosaic_0001>
module attributes {stable_mosaic.version = 11 : i64} {
  func.func @_pair_kernel_batch_major(%arg0: i32, %arg1: memref<128x16xf32, #tpu.memory_space<vmem>>, %arg2: memref<128x16xf32, #tpu.memory_space<vmem>>, %arg3: memref<16x64xf32, #tpu.memory_space<vmem>>, %arg4: memref<16x64xf32, #tpu.memory_space<vmem>>, %arg5: memref<1x64xf32, #tpu.memory_space<vmem>>, %arg6: memref<1x64xf32, #tpu.memory_space<vmem>>, %arg7: memref<1xf32, #tpu.memory_space<smem>>, %arg8: memref<1x1x128xf32, #tpu.memory_space<vmem>>) attributes {dimension_semantics = [#tpu.dimension_semantics<parallel>], iteration_bounds = array<i64: 1>, scalar_prefetch = 0 : i64, scratch_operands = 0 : i64, tpu.core_type = #tpu.core_type<tc>, window_params = [{transform_indices = @transform_0, window_bounds = array<i64: 128, 16>}, {transform_indices = @transform_1, window_bounds = array<i64: 128, 16>}, {pipeline_mode = #tpu.pipeline_mode<synchronous>, transform_indices = @transform_2, window_bounds = array<i64: 16, 64>}, {pipeline_mode = #tpu.pipeline_mode<synchronous>, transform_indices = @transform_3, window_bounds = array<i64: 16, 64>}, {pipeline_mode = #tpu.pipeline_mode<synchronous>, transform_indices = @transform_4, window_bounds = array<i64: 1, 64>}, {pipeline_mode = #tpu.pipeline_mode<synchronous>, transform_indices = @transform_5, window_bounds = array<i64: 1, 64>}, {transform_indices = @transform_6, window_bounds = array<i64: 1>}, {transform_indices = @transform_7, window_bounds = array<i64: 1, 1, 128>}]} {
    %c0 = arith.constant 0 : index
    %c0_0 = arith.constant 0 : index
    %0 = vector.load %arg1[%c0, %c0_0] : memref<128x16xf32, #tpu.memory_space<vmem>>, vector<128x16xf32>
    %c0_1 = arith.constant 0 : index
    %c0_2 = arith.constant 0 : index
    %1 = vector.load %arg3[%c0_1, %c0_2] : memref<16x64xf32, #tpu.memory_space<vmem>>, vector<16x64xf32>
    %cst = arith.constant dense<0.000000e+00> : vector<128x64xf32>
    %2 = tpu.matmul %0, %1, %cst {dimension_numbers = #tpu.dot_dimension_numbers<[1], [0], [0], [1], [0, 0, 1, 1], [], []>} : vector<128x16xf32>, vector<16x64xf32>, vector<128x64xf32> -> vector<128x64xf32>
    %c0_3 = arith.constant 0 : index
    %c0_4 = arith.constant 0 : index
    %3 = vector.load %arg2[%c0_3, %c0_4] : memref<128x16xf32, #tpu.memory_space<vmem>>, vector<128x16xf32>
    %c0_5 = arith.constant 0 : index
    %c0_6 = arith.constant 0 : index
    %4 = vector.load %arg4[%c0_5, %c0_6] : memref<16x64xf32, #tpu.memory_space<vmem>>, vector<16x64xf32>
    %cst_7 = arith.constant dense<0.000000e+00> : vector<128x64xf32>
    %5 = tpu.matmul %3, %4, %cst_7 {dimension_numbers = #tpu.dot_dimension_numbers<[1], [0], [0], [1], [0, 0, 1, 1], [], []>} : vector<128x16xf32>, vector<16x64xf32>, vector<128x64xf32> -> vector<128x64xf32>
    %6 = arith.addf %2, %5 : vector<128x64xf32>
    %c0_8 = arith.constant 0 : index
    %c0_9 = arith.constant 0 : index
    %7 = vector.load %arg5[%c0_8, %c0_9] : memref<1x64xf32, #tpu.memory_space<vmem>>, vector<1x64xf32>
    %8 = vector.broadcast %7 : vector<1x64xf32> to vector<128x64xf32>
    %9 = arith.addf %6, %8 : vector<128x64xf32>
    %cst_10 = arith.constant 0.000000e+00 : f32
    %10 = vector.broadcast %cst_10 : f32 to vector<128x64xf32>
    %11 = arith.maximumf %9, %10 : vector<128x64xf32>
    %c0_11 = arith.constant 0 : index
    %c0_12 = arith.constant 0 : index
    %12 = vector.load %arg6[%c0_11, %c0_12] : memref<1x64xf32, #tpu.memory_space<vmem>>, vector<1x64xf32>
    %cst_13 = arith.constant dense<0.000000e+00> : vector<1x128xf32>
    %13 = tpu.matmul %12, %11, %cst_13 {dimension_numbers = #tpu.dot_dimension_numbers<[1], [1], [0], [0], [0, 0, 1, 0], [], []>} : vector<1x64xf32>, vector<128x64xf32>, vector<1x128xf32> -> vector<1x128xf32>
    %c0_14 = arith.constant 0 : index
    %14 = memref.load %arg7[%c0_14] : memref<1xf32, #tpu.memory_space<smem>>
    %15 = vector.broadcast %14 : f32 to vector<1x128xf32>
    %16 = arith.addf %13, %15 : vector<1x128xf32>
    %c0_15 = arith.constant 0 : index
    %c0_16 = arith.constant 0 : index
    %c0_17 = arith.constant 0 : index
    %17 = vector.load %arg8[%c0_15, %c0_16, %c0_17] : memref<1x1x128xf32, #tpu.memory_space<vmem>>, vector<1x1x128xf32>
    %18 = vector.shape_cast %17 : vector<1x1x128xf32> to vector<1x128xf32>
    %19 = vector.shape_cast %16 : vector<1x128xf32> to vector<1x1x128xf32>
    tpu.vector_store %arg8[%c0_15, %c0_16, %c0_17], %19 {strides = array<i32>} : memref<1x1x128xf32, #tpu.memory_space<vmem>>, vector<1x1x128xf32>,
    return
  }
  func.func @transform_0(%arg0: i32) -> (i32, i32) {
    %c0_i32 = arith.constant 0 : i32
    %c0_i32_0 = arith.constant 0 : i32
    return %arg0, %c0_i32 : i32, i32
  }
  func.func @transform_1(%arg0: i32) -> (i32, i32) {
    %c0_i32 = arith.constant 0 : i32
    %c0_i32_0 = arith.constant 0 : i32
    return %arg0, %c0_i32 : i32, i32
  }
  func.func @transform_2(%arg0: i32) -> (i32, i32) {
    %c0_i32 = arith.constant 0 : i32
    %c0_i32_0 = arith.constant 0 : i32
    %c0_i32_1 = arith.constant 0 : i32
    return %c0_i32, %c0_i32_0 : i32, i32
  }
  func.func @transform_3(%arg0: i32) -> (i32, i32) {
    %c0_i32 = arith.constant 0 : i32
    %c0_i32_0 = arith.constant 0 : i32
    %c0_i32_1 = arith.constant 0 : i32
    return %c0_i32, %c0_i32_0 : i32, i32
  }
  func.func @transform_4(%arg0: i32) -> (i32, i32) {
    %c0_i32 = arith.constant 0 : i32
    %c0_i32_0 = arith.constant 0 : i32
    %c0_i32_1 = arith.constant 0 : i32
    return %c0_i32, %c0_i32_0 : i32, i32
  }
  func.func @transform_5(%arg0: i32) -> (i32, i32) {
    %c0_i32 = arith.constant 0 : i32
    %c0_i32_0 = arith.constant 0 : i32
    %c0_i32_1 = arith.constant 0 : i32
    return %c0_i32, %c0_i32_0 : i32, i32
  }
  func.func @transform_6(%arg0: i32) -> i32 {
    %c0_i32 = arith.constant 0 : i32
    %c0_i32_0 = arith.constant 0 : i32
    return %c0_i32 : i32
  }
  func.func @transform_7(%arg0: i32) -> (i32, i32, i32) {
    %c0_i32 = arith.constant 0 : i32
    %c0_i32_0 = arith.constant 0 : i32
    %c0_i32_1 = arith.constant 0 : i32
    return %arg0, %c0_i32, %c0_i32_0 : i32, i32, i32
  }
}

</mosaic_0001>

<llo_original>
// kernel: forward.1
$region0: #{forward.1}
  #allocation0 [shape = 'u32[]', space=smem, size = 0x4, offset = 0x4, fixed_abs, tag = 'smem constant byte address 0x4 - core index']
  #allocation1 [shape = 'u32[144,128]{1,0:T(1,128)}', space=vmem, size = 0x12000, scoped, tag = 'internal scratch']
  #allocation2 [shape = 'f32[1]{0:T(128)S(6)}', space=smem, size = 0x200, scoped, tag = 'scoped memory for forward.1']
  %s0 = inlined_call_operand.hbm [shape: f32[8,16], index: 0, kind: input, shape index: {}]
  %s1 = inlined_call_operand.hbm [shape: f32[8,16], index: 1, kind: input, shape index: {}]
  %s2 = inlined_call_operand.hbm [shape: f32[16,64], index: 2, kind: input, shape index: {}]
  %s3 = inlined_call_operand.hbm [shape: f32[16,64], index: 3, kind: input, shape index: {}]
  %s4 = inlined_call_operand.vmem [shape: f32[1,64], index: 4, kind: input, shape index: {}]
  %s5 = inlined_call_operand.vmem [shape: f32[1,64], index: 5, kind: input, shape index: {}]
  %s6 = inlined_call_operand.<no memory space> [shape: f32[1], index: 6, kind: input, shape index: {}]
  %s7 = inlined_call_operand.vmem [shape: f32[1,1,128], index: 7, kind: output, shape index: {}]
  %s8 = sld [smem:[#allocation0]]
  $region54: #{forward.1} parent=0
    _
  %s10 = ssub.s32 1, %s8
  %s11 = scalar_select 0, %s10, %s8
  %12 = sst [smem:[#allocation2]] %s6
  $region1: #{forward.1} parent=0
    #allocation3 [shape = 'u8[65536]{0}', space=vmem, size = 0x10000, scoped, tag = 'input window, operand 0, single buffered']
    #allocation4 [shape = 's32[1]{0}', space=sflag, size = 0x4, scoped, tag = 'scoped memory for forward.1']
    #allocation5 [shape = 'u8[65536]{0}', space=vmem, size = 0x10000, scoped, tag = 'input window, operand 1, single buffered']
    #allocation6 [shape = 's32[1]{0}', space=sflag, size = 0x4, scoped, tag = 'scoped memory for forward.1']
    #allocation7 [shape = 'u8[8192]{0}', space=vmem, size = 0x2000, scoped, tag = 'input window, operand 2, single buffered']
    #allocation8 [shape = 'u8[8192]{0}', space=vmem, size = 0x2000, scoped, tag = 'input window, operand 3, single buffered']
    #allocation9 [shape = 's32[1]{0}', space=sflag, size = 0x4, scoped, tag = 'scoped memory for forward.1']
    %13 = vsyncpa [#allocation4], 0
    %14 = vsyncpa [#allocation6], 0
    %15 = vsyncpa [#allocation9], 0
    // Predicated region
    $region2: #{forward.1} parent=1 // pred_check
      _
    $region3: #{forward.1} parent=1 // pred_check_branch
      %17 = sbr.rel (0) target = $region5
    $region4: #{forward.1} parent=1 // pred_region
      %s19 = ssub.s32 2048, 128
      %20 = vsyncadd [#allocation4], %s19
      %s21 = sshll.u32 [#allocation3], 4
      %s22 = int_to_ptr.vmem [resolvable:$true] %s21
      %27 = dma.hbm_to_vmem [thread:$0]  %s0, 128, %s22, [#allocation4], 128, 128, 8
    $region5: #{forward.1} parent=1 // pred_fallthru
      _
    // Predicated region
    $region6: #{forward.1} parent=1 // pred_check
      _
    $region7: #{forward.1} parent=1 // pred_check_branch
      %29 = sbr.rel (0) target = $region9
    $region8: #{forward.1} parent=1 // pred_region
      %s31 = ssub.s32 2048, 128
      %32 = vsyncadd [#allocation6], %s31
      %s33 = sshll.u32 [#allocation5], 4
      %s34 = int_to_ptr.vmem [resolvable:$true] %s33
      %39 = dma.hbm_to_vmem [thread:$0]  %s1, 128, %s34, [#allocation6], 128, 128, 8
    $region9: #{forward.1} parent=1 // pred_fallthru
      _
    // Predicated region
    $region10: #{forward.1} parent=1 // pred_check
      _
    $region11: #{forward.1} parent=1 // pred_check_branch
      %41 = sbr.rel (0) target = $region13
    $region12: #{forward.1} parent=1 // pred_region
      %s43 = ssub.s32 256, 256
      %44 = vsyncadd [#allocation6], %s43
      %s45 = sshll.u32 [#allocation7], 4
      %s46 = int_to_ptr.vmem [resolvable:$true] %s45
      %51 = dma.hbm_to_vmem [thread:$0]  %s2, 256, %s46, [#allocation6], 128, 128, 8
    $region13: #{forward.1} parent=1 // pred_fallthru
      _
    // Predicated region
    $region14: #{forward.1} parent=1 // pred_check
      _
    $region15: #{forward.1} parent=1 // pred_check_branch
      %53 = sbr.rel (0) target = $region17
    $region16: #{forward.1} parent=1 // pred_region
      %s55 = ssub.s32 256, 256
      %56 = vsyncadd [#allocation9], %s55
      %s57 = sshll.u32 [#allocation8], 4
      %s58 = int_to_ptr.vmem [resolvable:$true] %s57
      %63 = dma.hbm_to_vmem [thread:$0]  %s3, 256, %s58, [#allocation9], 128, 128, 8
    $region17: #{forward.1} parent=1 // pred_fallthru
      _
    // Predicated region
    $region18: #{forward.1} parent=1 // pred_check
      _
    $region19: #{forward.1} parent=1 // pred_check_branch
      %65 = sbr.rel (0) target = $region21
    $region20: #{forward.1} parent=1 // pred_region
      _
    $region21: #{forward.1} parent=1 // pred_fallthru
      _
    // Predicated region
    $region22: #{forward.1} parent=1 // pred_check
      _
    $region23: #{forward.1} parent=1 // pred_check_branch
      %67 = sbr.rel (0) target = $region25
    $region24: #{forward.1} parent=1 // pred_region
      _
    $region25: #{forward.1} parent=1 // pred_fallthru
      _
    // Predicated region
    $region26: #{forward.1} parent=1 // pred_check
      _
    $region27: #{forward.1} parent=1 // pred_check_branch
      %69 = sbr.rel (0) target = $region29
    $region28: #{forward.1} parent=1 // pred_region
      _
    $region29: #{forward.1} parent=1 // pred_fallthru
      _
    // Predicated region
    $region30: #{forward.1} parent=1 // pred_check
      _
    $region31: #{forward.1} parent=1 // pred_check_branch
      %71 = sbr.rel (0) target = $region33
    $region32: #{forward.1} parent=1 // pred_region
      %72 = dma.done [#allocation4], 2048
    $region33: #{forward.1} parent=1 // pred_fallthru
      _
    // Predicated region
    $region34: #{forward.1} parent=1 // pred_check
      _
    $region35: #{forward.1} parent=1 // pred_check_branch
      %74 = sbr.rel (0) target = $region37
    $region36: #{forward.1} parent=1 // pred_region
      %75 = dma.done [#allocation6], 2048
    $region37: #{forward.1} parent=1 // pred_fallthru
      _
    // Predicated region
    $region38: #{forward.1} parent=1 // pred_check
      _
    $region39: #{forward.1} parent=1 // pred_check_branch
      %77 = sbr.rel (0) target = $region41
    $region40: #{forward.1} parent=1 // pred_region
      %78 = dma.done [#allocation6], 256
    $region41: #{forward.1} parent=1 // pred_fallthru
      _
    // Predicated region
    $region42: #{forward.1} parent=1 // pred_check
      _
    $region43: #{forward.1} parent=1 // pred_check_branch
      %80 = sbr.rel (0) target = $region45
    $region44: #{forward.1} parent=1 // pred_region
      %81 = dma.done [#allocation9], 256
    $region45: #{forward.1} parent=1 // pred_fallthru
      _
    %v82 = vld [vmem:[#allocation3] sm:$0xff]
    %v83 = vld [vmem:[#allocation3 + $0x8] sm:$0xff]
    %v84 = vld [vmem:[#allocation3 + $0x10] sm:$0xff]
    %v85 = vld [vmem:[#allocation3 + $0x18] sm:$0xff]
    %v86 = vld [vmem:[#allocation3 + $0x20] sm:$0xff]
    %v87 = vld [vmem:[#allocation3 + $0x28] sm:$0xff]
    %v88 = vld [vmem:[#allocation3 + $0x30] sm:$0xff]
    %v89 = vld [vmem:[#allocation3 + $0x38] sm:$0xff]
    %v90 = vld [vmem:[#allocation3 + $0x40] sm:$0xff]
    %v91 = vld [vmem:[#allocation3 + $0x48] sm:$0xff]
    %v92 = vld [vmem:[#allocation3 + $0x50] sm:$0xff]
    %v93 = vld [vmem:[#allocation3 + $0x58] sm:$0xff]
    %v94 = vld [vmem:[#allocation3 + $0x60] sm:$0xff]
    %v95 = vld [vmem:[#allocation3 + $0x68] sm:$0xff]
    %v96 = vld [vmem:[#allocation3 + $0x70] sm:$0xff]
    %v97 = vld [vmem:[#allocation3 + $0x78] sm:$0xff]
    %v98 = vld [vmem:[#allocation7] sm:$0xff]
    %v99 = vld [vmem:[#allocation7 + $0x8] sm:$0xff]
    %v100 = vld [vmem:[#allocation5] sm:$0xff]
    %v101 = vld [vmem:[#allocation5 + $0x8] sm:$0xff]
    %v102 = vld [vmem:[#allocation5 + $0x10] sm:$0xff]
    %v103 = vld [vmem:[#allocation5 + $0x18] sm:$0xff]
    %v104 = vld [vmem:[#allocation5 + $0x20] sm:$0xff]
    %v105 = vld [vmem:[#allocation5 + $0x28] sm:$0xff]
    %v106 = vld [vmem:[#allocation5 + $0x30] sm:$0xff]
    %v107 = vld [vmem:[#allocation5 + $0x38] sm:$0xff]
    %v108 = vld [vmem:[#allocation5 + $0x40] sm:$0xff]
    %v109 = vld [vmem:[#allocation5 + $0x48] sm:$0xff]
    %v110 = vld [vmem:[#allocation5 + $0x50] sm:$0xff]
    %v111 = vld [vmem:[#allocation5 + $0x58] sm:$0xff]
    %v112 = vld [vmem:[#allocation5 + $0x60] sm:$0xff]
    %v113 = vld [vmem:[#allocation5 + $0x68] sm:$0xff]
    %v114 = vld [vmem:[#allocation5 + $0x70] sm:$0xff]
    %v115 = vld [vmem:[#allocation5 + $0x78] sm:$0xff]
    %v116 = vld [vmem:[#allocation8] sm:$0xff]
    %v117 = vld [vmem:[#allocation8 + $0x8] sm:$0xff]
    %vm118 = vcmask 130048
    %v120 = vsel %vm118, %v100, 0
    %v123 = vsel %vm118, %v101, 0
    %v126 = vsel %vm118, %v102, 0
    %v129 = vsel %vm118, %v103, 0
    %v132 = vsel %vm118, %v104, 0
    %v135 = vsel %vm118, %v105, 0
    %v138 = vsel %vm118, %v106, 0
    %v141 = vsel %vm118, %v107, 0
    %v144 = vsel %vm118, %v108, 0
    %v147 = vsel %vm118, %v109, 0
    %v150 = vsel %vm118, %v110, 0
    %v153 = vsel %vm118, %v111, 0
    %v156 = vsel %vm118, %v112, 0
    %v159 = vsel %vm118, %v113, 0
    %v162 = vsel %vm118, %v114, 0
    %v165 = vsel %vm118, %v115, 0
    %167 = vmatprep.subr.mxu0 0.0
    %168 = vmatpush1.msra.mxu0 %v116
    %169 = vmatprep.subr.mxu0 0.0
    %170 = vmatpush1.msra.mxu0 %v117
    %171 = vmatprep.subr.mxu0 0.0
    %172 = vmatpush1.msra.mxu0 0.0
    %173 = vmatprep.subr.mxu0 0.0
    %174 = vmatpush1.msra.mxu0 0.0
    %175 = vmatprep.subr.mxu0 0.0
    %176 = vmatpush1.msra.mxu0 0.0
    %177 = vmatprep.subr.mxu0 0.0
    %178 = vmatpush1.msra.mxu0 0.0
    %179 = vmatprep.subr.mxu0 0.0
    %180 = vmatpush1.msra.mxu0 0.0
    %181 = vmatprep.subr.mxu0 0.0
    %182 = vmatpush1.msra.mxu0 0.0
    %183 = vmatprep.subr.mxu0 0.0
    %184 = vmatpush1.msra.mxu0 0.0
    %185 = vmatprep.subr.mxu0 0.0
    %186 = vmatpush1.msra.mxu0 0.0
    %187 = vmatprep.subr.mxu0 0.0
    %188 = vmatpush1.msra.mxu0 0.0
    %189 = vmatprep.subr.mxu0 0.0
    %190 = vmatpush1.msra.mxu0 0.0
    %191 = vmatprep.subr.mxu0 0.0
    %192 = vmatpush1.msra.mxu0 0.0
    %193 = vmatprep.subr.mxu0 0.0
    %194 = vmatpush1.msra.mxu0 0.0
    %195 = vmatprep.subr.mxu0 0.0
    %196 = vmatpush1.msra.mxu0 0.0
    %197 = vmatprep.subr.mxu0 0.0
    %198 = vmatpush1.msra.mxu0 0.0
    %199 = vmatprep.subr.mxu0 0.0
    %200 = vmatpush1.msra.mxu0 0.0
    %201 = vmatprep.subr.mxu0 0.0
    %202 = vmatpush1.msra.mxu0 0.0
    %203 = vmatprep.subr.mxu0 0.0
    %204 = vmatpush1.msra.mxu0 0.0
    %205 = vmatprep.subr.mxu0 0.0
    %206 = vmatpush1.msra.mxu0 0.0
    %207 = vmatprep.subr.mxu0 0.0
    %208 = vmatpush1.msra.mxu0 0.0
    %209 = vmatprep.subr.mxu0 0.0
    %210 = vmatpush1.msra.mxu0 0.0
    %211 = vmatprep.subr.mxu0 0.0
    %212 = vmatpush1.msra.mxu0 0.0
    %213 = vmatprep.subr.mxu0 0.0
    %214 = vmatpush1.msra.mxu0 0.0
    %215 = vmatprep.subr.mxu0 0.0
    %216 = vmatpush1.msra.mxu0 0.0
    %217 = vmatprep.subr.mxu0 0.0
    %218 = vmatpush1.msra.mxu0 0.0
    %219 = vmatprep.subr.mxu0 0.0
    %220 = vmatpush1.msra.mxu0 0.0
    %221 = vmatprep.subr.mxu0 0.0
    %222 = vmatpush1.msra.mxu0 0.0
    %223 = vmatprep.subr.mxu0 0.0
    %224 = vmatpush1.msra.mxu0 0.0
    %225 = vmatprep.subr.mxu0 0.0
    %226 = vmatpush1.msra.mxu0 0.0
    %227 = vmatprep.subr.mxu0 0.0
    %228 = vmatpush1.msra.mxu0 0.0
    %229 = vmatprep.subr.mxu0 0.0
    %230 = vmatpush1.msra.mxu0 0.0
    %231 = vmatprep.mubr.f32.mxu0 0.0
    %232 = vmatmul.mubr.f32.gmra.mrb[0].mxu0 %v120
    %v233 = vpop.f32.mrb[0].mxu0
    %v234 = vadd.f32 0.0, %v233
    %v235 = vpop.f32.mrb[0].mxu0
    %236 = vmatprep.mubr.f32.mxu0 0.0
    %237 = vmatmul.mubr.f32.gmra.mrb[0].mxu0 %v123
    %v238 = vpop.f32.mrb[0].mxu0
    %v239 = vadd.f32 0.0, %v238
    %v240 = vpop.f32.mrb[0].mxu0
    %241 = vmatprep.mubr.f32.mxu0 0.0
    %242 = vmatmul.mubr.f32.gmra.mrb[0].mxu0 %v126
    %v243 = vpop.f32.mrb[0].mxu0
    %v244 = vadd.f32 0.0, %v243
    %v245 = vpop.f32.mrb[0].mxu0
    %246 = vmatprep.mubr.f32.mxu0 0.0
    %247 = vmatmul.mubr.f32.gmra.mrb[0].mxu0 %v129
    %v248 = vpop.f32.mrb[0].mxu0
    %v249 = vadd.f32 0.0, %v248
    %v250 = vpop.f32.mrb[0].mxu0
    %251 = vmatprep.mubr.f32.mxu0 0.0
    %252 = vmatmul.mubr.f32.gmra.mrb[0].mxu0 %v132
    %v253 = vpop.f32.mrb[0].mxu0
    %v254 = vadd.f32 0.0, %v253
    %v255 = vpop.f32.mrb[0].mxu0
    %256 = vmatprep.mubr.f32.mxu0 0.0
    %257 = vmatmul.mubr.f32.gmra.mrb[0].mxu0 %v135
    %v258 = vpop.f32.mrb[0].mxu0
    %v259 = vadd.f32 0.0, %v258
    %v260 = vpop.f32.mrb[0].mxu0
    %261 = vmatprep.mubr.f32.mxu0 0.0
    %262 = vmatmul.mubr.f32.gmra.mrb[0].mxu0 %v138
    %v263 = vpop.f32.mrb[0].mxu0
    %v264 = vadd.f32 0.0, %v263
    %v265 = vpop.f32.mrb[0].mxu0
    %266 = vmatprep.mubr.f32.mxu0 0.0
    %267 = vmatmul.mubr.f32.gmra.mrb[0].mxu0 %v141
    %v268 = vpop.f32.mrb[0].mxu0
    %v269 = vadd.f32 0.0, %v268
    %v270 = vpop.f32.mrb[0].mxu0
    %271 = vmatprep.mubr.f32.mxu0 0.0
    %272 = vmatmul.mubr.f32.gmra.mrb[0].mxu0 %v144
    %v273 = vpop.f32.mrb[0].mxu0
    %v274 = vadd.f32 0.0, %v273
    %v275 = vpop.f32.mrb[0].mxu0
    %276 = vmatprep.mubr.f32.mxu0 0.0
    %277 = vmatmul.mubr.f32.gmra.mrb[0].mxu0 %v147
    %v278 = vpop.f32.mrb[0].mxu0
    %v279 = vadd.f32 0.0, %v278
    %v280 = vpop.f32.mrb[0].mxu0
    %281 = vmatprep.mubr.f32.mxu0 0.0
    %282 = vmatmul.mubr.f32.gmra.mrb[0].mxu0 %v150
    %v283 = vpop.f32.mrb[0].mxu0
    %v284 = vadd.f32 0.0, %v283
    %v285 = vpop.f32.mrb[0].mxu0
    %286 = vmatprep.mubr.f32.mxu0 0.0
    %287 = vmatmul.mubr.f32.gmra.mrb[0].mxu0 %v153
    %v288 = vpop.f32.mrb[0].mxu0
    %v289 = vadd.f32 0.0, %v288
    %v290 = vpop.f32.mrb[0].mxu0
    %291 = vmatprep.mubr.f32.mxu0 0.0
    %292 = vmatmul.mubr.f32.gmra.mrb[0].mxu0 %v156
    %v293 = vpop.f32.mrb[0].mxu0
    %v294 = vadd.f32 0.0, %v293
    %v295 = vpop.f32.mrb[0].mxu0
    %296 = vmatprep.mubr.f32.mxu0 0.0
    %297 = vmatmul.mubr.f32.gmra.mrb[0].mxu0 %v159
    %v298 = vpop.f32.mrb[0].mxu0
    %v299 = vadd.f32 0.0, %v298
    %v300 = vpop.f32.mrb[0].mxu0
    %301 = vmatprep.mubr.f32.mxu0 0.0
    %302 = vmatmul.mubr.f32.gmra.mrb[0].mxu0 %v162
    %v303 = vpop.f32.mrb[0].mxu0
    %v304 = vadd.f32 0.0, %v303
    %v305 = vpop.f32.mrb[0].mxu0
    %306 = vmatprep.mubr.f32.mxu0 0.0
    %307 = vmatmul.mubr.f32.gmra.mrb[0].mxu0 %v165
    %v308 = vpop.f32.mrb[0].mxu0
    %v309 = vadd.f32 0.0, %v308
    %v310 = vpop.f32.mrb[0].mxu0
    %311 = vdwg.mxu0
    %v313 = vsel %vm118, %v82, 0
    %v316 = vsel %vm118, %v83, 0
    %v319 = vsel %vm118, %v84, 0
    %v322 = vsel %vm118, %v85, 0
    %v325 = vsel %vm118, %v86, 0
    %v328 = vsel %vm118, %v87, 0
    %v331 = vsel %vm118, %v88, 0
    %v334 = vsel %vm118, %v89, 0
    %v337 = vsel %vm118, %v90, 0
    %v340 = vsel %vm118, %v91, 0
    %v343 = vsel %vm118, %v92, 0
    %v346 = vsel %vm118, %v93, 0
    %v349 = vsel %vm118, %v94, 0
    %v352 = vsel %vm118, %v95, 0
    %v355 = vsel %vm118, %v96, 0
    %v358 = vsel %vm118, %v97, 0
    %360 = vmatprep.subr.mxu0 0.0
    %361 = vmatpush1.msra.mxu0 %v98
    %362 = vmatprep.subr.mxu0 0.0
    %363 = vmatpush1.msra.mxu0 %v99
    %364 = vmatprep.subr.mxu0 0.0
    %365 = vmatpush1.msra.mxu0 0.0
    %366 = vmatprep.subr.mxu0 0.0
    %367 = vmatpush1.msra.mxu0 0.0
    %368 = vmatprep.subr.mxu0 0.0
    %369 = vmatpush1.msra.mxu0 0.0
    %370 = vmatprep.subr.mxu0 0.0
    %371 = vmatpush1.msra.mxu0 0.0
    %372 = vmatprep.subr.mxu0 0.0
    %373 = vmatpush1.msra.mxu0 0.0
    %374 = vmatprep.subr.mxu0 0.0
    %375 = vmatpush1.msra.mxu0 0.0
    %376 = vmatprep.subr.mxu0 0.0
    %377 = vmatpush1.msra.mxu0 0.0
    %378 = vmatprep.subr.mxu0 0.0
    %379 = vmatpush1.msra.mxu0 0.0
    %380 = vmatprep.subr.mxu0 0.0
    %381 = vmatpush1.msra.mxu0 0.0
    %382 = vmatprep.subr.mxu0 0.0
    %383 = vmatpush1.msra.mxu0 0.0
    %384 = vmatprep.subr.mxu0 0.0
    %385 = vmatpush1.msra.mxu0 0.0
    %386 = vmatprep.subr.mxu0 0.0
    %387 = vmatpush1.msra.mxu0 0.0
    %388 = vmatprep.subr.mxu0 0.0
    %389 = vmatpush1.msra.mxu0 0.0
    %390 = vmatprep.subr.mxu0 0.0
    %391 = vmatpush1.msra.mxu0 0.0
    %392 = vmatprep.subr.mxu0 0.0
    %393 = vmatpush1.msra.mxu0 0.0
    %394 = vmatprep.subr.mxu0 0.0
    %395 = vmatpush1.msra.mxu0 0.0
    %396 = vmatprep.subr.mxu0 0.0
    %397 = vmatpush1.msra.mxu0 0.0
    %398 = vmatprep.subr.mxu0 0.0
    %399 = vmatpush1.msra.mxu0 0.0
    %400 = vmatprep.subr.mxu0 0.0
    %401 = vmatpush1.msra.mxu0 0.0
    %402 = vmatprep.subr.mxu0 0.0
    %403 = vmatpush1.msra.mxu0 0.0
    %404 = vmatprep.subr.mxu0 0.0
    %405 = vmatpush1.msra.mxu0 0.0
    %406 = vmatprep.subr.mxu0 0.0
    %407 = vmatpush1.msra.mxu0 0.0
    %408 = vmatprep.subr.mxu0 0.0
    %409 = vmatpush1.msra.mxu0 0.0
    %410 = vmatprep.subr.mxu0 0.0
    %411 = vmatpush1.msra.mxu0 0.0
    %412 = vmatprep.subr.mxu0 0.0
    %413 = vmatpush1.msra.mxu0 0.0
    %414 = vmatprep.subr.mxu0 0.0
    %415 = vmatpush1.msra.mxu0 0.0
    %416 = vmatprep.subr.mxu0 0.0
    %417 = vmatpush1.msra.mxu0 0.0
    %418 = vmatprep.subr.mxu0 0.0
    %419 = vmatpush1.msra.mxu0 0.0
    %420 = vmatprep.subr.mxu0 0.0
    %421 = vmatpush1.msra.mxu0 0.0
    %422 = vmatprep.subr.mxu0 0.0
    %423 = vmatpush1.msra.mxu0 0.0
    %424 = vmatprep.mubr.f32.mxu0 0.0
    %425 = vmatmul.mubr.f32.gmra.mrb[0].mxu0 %v313
    %v426 = vpop.f32.mrb[0].mxu0
    %v427 = vadd.f32 %v234, %v426
    %v428 = vpop.f32.mrb[0].mxu0
    %429 = vmatprep.mubr.f32.mxu0 0.0
    %430 = vmatmul.mubr.f32.gmra.mrb[0].mxu0 %v316
    %v431 = vpop.f32.mrb[0].mxu0
    %v432 = vadd.f32 %v239, %v431
    %v433 = vpop.f32.mrb[0].mxu0
    %434 = vmatprep.mubr.f32.mxu0 0.0
    %435 = vmatmul.mubr.f32.gmra.mrb[0].mxu0 %v319
    %v436 = vpop.f32.mrb[0].mxu0
    %v437 = vadd.f32 %v244, %v436
    %v438 = vpop.f32.mrb[0].mxu0
    %439 = vmatprep.mubr.f32.mxu0 0.0
    %440 = vmatmul.mubr.f32.gmra.mrb[0].mxu0 %v322
    %v441 = vpop.f32.mrb[0].mxu0
    %v442 = vadd.f32 %v249, %v441
    %v443 = vpop.f32.mrb[0].mxu0
    %444 = vmatprep.mubr.f32.mxu0 0.0
    %445 = vmatmul.mubr.f32.gmra.mrb[0].mxu0 %v325
    %v446 = vpop.f32.mrb[0].mxu0
    %v447 = vadd.f32 %v254, %v446
    %v448 = vpop.f32.mrb[0].mxu0
    %449 = vmatprep.mubr.f32.mxu0 0.0
    %450 = vmatmul.mubr.f32.gmra.mrb[0].mxu0 %v328
    %v451 = vpop.f32.mrb[0].mxu0
    %v452 = vadd.f32 %v259, %v451
    %v453 = vpop.f32.mrb[0].mxu0
    %454 = vmatprep.mubr.f32.mxu0 0.0
    %455 = vmatmul.mubr.f32.gmra.mrb[0].mxu0 %v331
    %v456 = vpop.f32.mrb[0].mxu0
    %v457 = vadd.f32 %v264, %v456
    %v458 = vpop.f32.mrb[0].mxu0
    %459 = vmatprep.mubr.f32.mxu0 0.0
    %460 = vmatmul.mubr.f32.gmra.mrb[0].mxu0 %v334
    %v461 = vpop.f32.mrb[0].mxu0
    %v462 = vadd.f32 %v269, %v461
    %v463 = vpop.f32.mrb[0].mxu0
    %464 = vmatprep.mubr.f32.mxu0 0.0
    %465 = vmatmul.mubr.f32.gmra.mrb[0].mxu0 %v337
    %v466 = vpop.f32.mrb[0].mxu0
    %v467 = vadd.f32 %v274, %v466
    %v468 = vpop.f32.mrb[0].mxu0
    %469 = vmatprep.mubr.f32.mxu0 0.0
    %470 = vmatmul.mubr.f32.gmra.mrb[0].mxu0 %v340
    %v471 = vpop.f32.mrb[0].mxu0
    %v472 = vadd.f32 %v279, %v471
    %v473 = vpop.f32.mrb[0].mxu0
    %474 = vmatprep.mubr.f32.mxu0 0.0
    %475 = vmatmul.mubr.f32.gmra.mrb[0].mxu0 %v343
    %v476 = vpop.f32.mrb[0].mxu0
    %v477 = vadd.f32 %v284, %v476
    %v478 = vpop.f32.mrb[0].mxu0
    %479 = vmatprep.mubr.f32.mxu0 0.0
    %480 = vmatmul.mubr.f32.gmra.mrb[0].mxu0 %v346
    %v481 = vpop.f32.mrb[0].mxu0
    %v482 = vadd.f32 %v289, %v481
    %v483 = vpop.f32.mrb[0].mxu0
    %484 = vmatprep.mubr.f32.mxu0 0.0
    %485 = vmatmul.mubr.f32.gmra.mrb[0].mxu0 %v349
    %v486 = vpop.f32.mrb[0].mxu0
    %v487 = vadd.f32 %v294, %v486
    %v488 = vpop.f32.mrb[0].mxu0
    %489 = vmatprep.mubr.f32.mxu0 0.0
    %490 = vmatmul.mubr.f32.gmra.mrb[0].mxu0 %v352
    %v491 = vpop.f32.mrb[0].mxu0
    %v492 = vadd.f32 %v299, %v491
    %v493 = vpop.f32.mrb[0].mxu0
    %494 = vmatprep.mubr.f32.mxu0 0.0
    %495 = vmatmul.mubr.f32.gmra.mrb[0].mxu0 %v355
    %v496 = vpop.f32.mrb[0].mxu0
    %v497 = vadd.f32 %v304, %v496
    %v498 = vpop.f32.mrb[0].mxu0
    %499 = vmatprep.mubr.f32.mxu0 0.0
    %500 = vmatmul.mubr.f32.gmra.mrb[0].mxu0 %v358
    %v501 = vpop.f32.mrb[0].mxu0
    %v502 = vadd.f32 %v309, %v501
    %v503 = vpop.f32.mrb[0].mxu0
    %504 = vdwg.mxu0
    %v505 = vld [vmem:[%s4] sm:$0x1]
    %v507 = vlaneseq
    %v508 = vshrl.u32 %v507, 7
    %v509 = vsub.s32 0, %v508
    %v510 = vrot.slane %v505, %v509
    %v512 = vadd.f32 %v427, %v510
    %v513 = vadd.f32 %v432, %v510
    %v514 = vadd.f32 %v437, %v510
    %v515 = vadd.f32 %v442, %v510
    %v516 = vadd.f32 %v447, %v510
    %v517 = vadd.f32 %v452, %v510
    %v518 = vadd.f32 %v457, %v510
    %v519 = vadd.f32 %v462, %v510
    %v520 = vadd.f32 %v467, %v510
    %v521 = vadd.f32 %v472, %v510
    %v522 = vadd.f32 %v477, %v510
    %v523 = vadd.f32 %v482, %v510
    %v524 = vadd.f32 %v487, %v510
    %v525 = vadd.f32 %v492, %v510
    %v526 = vadd.f32 %v497, %v510
    %v527 = vadd.f32 %v502, %v510
    %v528 = vmax.f32 %v512, 0.0
    %v529 = vmax.f32 %v513, 0.0
    %v530 = vmax.f32 %v514, 0.0
    %v531 = vmax.f32 %v515, 0.0
    %v532 = vmax.f32 %v516, 0.0
    %v533 = vmax.f32 %v517, 0.0
    %v534 = vmax.f32 %v518, 0.0
    %v535 = vmax.f32 %v519, 0.0
    %v536 = vmax.f32 %v520, 0.0
    %v537 = vmax.f32 %v521, 0.0
    %v538 = vmax.f32 %v522, 0.0
    %v539 = vmax.f32 %v523, 0.0
    %v540 = vmax.f32 %v524, 0.0
    %v541 = vmax.f32 %v525, 0.0
    %v542 = vmax.f32 %v526, 0.0
    %v543 = vmax.f32 %v527, 0.0
    %v544 = vld [vmem:[%s5] sm:$0x1]
    %s545 = sld [smem:[#allocation2]]
    %v546 = vstv %s545
    %vm547 = vcmask 523264
    %v549 = vsel %vm547, %v544, 0
    %v552 = vsel %vm547, %v528, 0
    %v555 = vsel %vm547, %v529, 0
    %v558 = vsel %vm547, %v530, 0
    %v561 = vsel %vm547, %v531, 0
    %v564 = vsel %vm547, %v532, 0
    %v567 = vsel %vm547, %v533, 0
    %v570 = vsel %vm547, %v534, 0
    %v573 = vsel %vm547, %v535, 0
    %v576 = vsel %vm547, %v536, 0
    %v579 = vsel %vm547, %v537, 0
    %v582 = vsel %vm547, %v538, 0
    %v585 = vsel %vm547, %v539, 0
    %v588 = vsel %vm547, %v540, 0
    %v591 = vsel %vm547, %v541, 0
    %v594 = vsel %vm547, %v542, 0
    %v597 = vsel %vm547, %v543, 0
    %599 = vmatprep.subr.mxu0 0.0
    %600 = vmatpush1.xpose.msra.mxu0 %v552
    %601 = vmatprep.subr.mxu0 0.0
    %602 = vmatpush1.xpose.msra.mxu0 %v555
    %603 = vmatprep.subr.mxu0 0.0
    %604 = vmatpush1.xpose.msra.mxu0 %v558
    %605 = vmatprep.subr.mxu0 0.0
    %606 = vmatpush1.xpose.msra.mxu0 %v561
    %607 = vmatprep.subr.mxu0 0.0
    %608 = vmatpush1.xpose.msra.mxu0 %v564
    %609 = vmatprep.subr.mxu0 0.0
    %610 = vmatpush1.xpose.msra.mxu0 %v567
    %611 = vmatprep.subr.mxu0 0.0
    %612 = vmatpush1.xpose.msra.mxu0 %v570
    %613 = vmatprep.subr.mxu0 0.0
    %614 = vmatpush1.xpose.msra.mxu0 %v573
    %615 = vmatprep.subr.mxu0 0.0
    %616 = vmatpush1.xpose.msra.mxu0 %v576
    %617 = vmatprep.subr.mxu0 0.0
    %618 = vmatpush1.xpose.msra.mxu0 %v579
    %619 = vmatprep.subr.mxu0 0.0
    %620 = vmatpush1.xpose.msra.mxu0 %v582
    %621 = vmatprep.subr.mxu0 0.0
    %622 = vmatpush1.xpose.msra.mxu0 %v585
    %623 = vmatprep.subr.mxu0 0.0
    %624 = vmatpush1.xpose.msra.mxu0 %v588
    %625 = vmatprep.subr.mxu0 0.0
    %626 = vmatpush1.xpose.msra.mxu0 %v591
    %627 = vmatprep.subr.mxu0 0.0
    %628 = vmatpush1.xpose.msra.mxu0 %v594
    %629 = vmatprep.subr.mxu0 0.0
    %630 = vmatpush1.xpose.msra.mxu0 %v597
    %631 = vmatprep.subr.mxu0 0.0
    %632 = vmatpush1.xpose.msra.mxu0 0.0
    %633 = vmatprep.subr.mxu0 0.0
    %634 = vmatpush1.xpose.msra.mxu0 0.0
    %635 = vmatprep.subr.mxu0 0.0
    %636 = vmatpush1.xpose.msra.mxu0 0.0
    %637 = vmatprep.subr.mxu0 0.0
    %638 = vmatpush1.xpose.msra.mxu0 0.0
    %639 = vmatprep.subr.mxu0 0.0
    %640 = vmatpush1.xpose.msra.mxu0 0.0
    %641 = vmatprep.subr.mxu0 0.0
    %642 = vmatpush1.xpose.msra.mxu0 0.0
    %643 = vmatprep.subr.mxu0 0.0
    %644 = vmatpush1.xpose.msra.mxu0 0.0
    %645 = vmatprep.subr.mxu0 0.0
    %646 = vmatpush1.xpose.msra.mxu0 0.0
    %647 = vmatprep.subr.mxu0 0.0
    %648 = vmatpush1.xpose.msra.mxu0 0.0
    %649 = vmatprep.subr.mxu0 0.0
    %650 = vmatpush1.xpose.msra.mxu0 0.0
    %651 = vmatprep.subr.mxu0 0.0
    %652 = vmatpush1.xpose.msra.mxu0 0.0
    %653 = vmatprep.subr.mxu0 0.0
    %654 = vmatpush1.xpose.msra.mxu0 0.0
    %655 = vmatprep.subr.mxu0 0.0
    %656 = vmatpush1.xpose.msra.mxu0 0.0
    %657 = vmatprep.subr.mxu0 0.0
    %658 = vmatpush1.xpose.msra.mxu0 0.0
    %659 = vmatprep.subr.mxu0 0.0
    %660 = vmatpush1.xpose.msra.mxu0 0.0
    %661 = vmatprep.subr.mxu0 0.0
    %662 = vmatpush1.xpose.msra.mxu0 0.0
    %663 = vmatprep.mubr.f32.mxu0 0.0
    %664 = vmatmul.mubr.f32.gmra.mrb[0].mxu0 %v549
    %v665 = vpop.f32.mrb[0].mxu0
    %v666 = vadd.f32 %v546, %v665
    %v667 = vpop.f32.mrb[0].mxu0
    %668 = vdwg.mxu0
    %669 = vst [vmem:[%s7] sm:$0x1] %v666
    // Predicated region
    $region46: #{forward.1} parent=1 // pred_check
      _
    $region47: #{forward.1} parent=1 // pred_check_branch
      %671 = sbr.rel (0) target = $region49
    $region48: #{forward.1} parent=1 // pred_region
      _
    $region49: #{forward.1} parent=1 // pred_fallthru
      _
    // Predicated region
    $region50: #{forward.1} parent=1 // pred_check
      _
    $region51: #{forward.1} parent=1 // pred_check_branch
      %673 = sbr.rel (0) target = $region53
    $region52: #{forward.1} parent=1 // pred_region
      _
    $region53: #{forward.1} parent=1 // pred_fallthru
      _
    %674 = vsyncpa [#allocation4], 1
    %675 = vsyncpa [#allocation6], 1
    %676 = vsyncpa [#allocation9], 1

</llo_original>
